<compile_context>
chip_gen: v5e
topology: v5e:2x2
jax: 0.10.0
libtpu: 0.0.40
codegen_flags: <defaults>
</compile_context>

<pallas_src>
import jax
import jax.numpy as jnp
from jax.experimental import pallas as pl
from jax.experimental.pallas import tpu as pltpu

NEG_BIG = -1e30  # f32 bias for lane-padded classes. NOTE: must stay f32 and be added
                 # post-accumulation; never cast to bf16 / fold into the bf16 matmul.


def _round_up(x, m):
    return ((x + m - 1) // m) * m


def _pick_tile(dim, target, unit=128):
    """Largest multiple of `unit` dividing `dim` (itself a multiple of unit), <= target."""
    m = dim // unit
    best = 1
    for d in range(1, m + 1):
        if m % d == 0 and d * unit <= target:
            best = d
    return best * unit


def _vmem_capacity_bytes():
    try:
        return int(pltpu.get_tpu_info().vmem_capacity_bytes)
    except Exception:
        return 64 * 1024 * 1024  # conservative fallback (v7x per-TC VMEM)


def _sigmoid_stable(z):
    # 0.5*(tanh(z/2)+1): numerically saturating, runs on the EUP, no reciprocal needed.
    return 0.5 * (jnp.tanh(0.5 * z) + 1.0)


# ----------------------------------------------------------------------------
# Fused path: whole (padded) weights resident in VMEM, grid over batch tiles.
# ----------------------------------------------------------------------------
def _pasnet_fused_kernel(x_ref, w1_ref, b1_ref, w2_ref, b2_ref, w3_ref, b3_ref, o_ref):
    cd = w1_ref.dtype  # MXU input dtype (bf16 or f32); accumulation stays f32.

    # Layer 1: Linear + sigmoid.  Downcast immediately so only the narrow copy stays live.
    z1 = jnp.dot(x_ref[...], w1_ref[...], preferred_element_type=jnp.float32) + b1_ref[...]
    h1 = _sigmoid_stable(z1).astype(cd)

    # Layer 2: Linear + sigmoid.
    z2 = jnp.dot(h1, w2_ref[...], preferred_element_type=jnp.float32) + b2_ref[...]
    h2 = _sigmoid_stable(z2).astype(cd)

    # Layer 3: Linear + softmax over the lane-padded class axis.
    # Padded classes carry a -1e30 f32 bias -> exp(z - m) underflows to exactly 0.
    z3 = jnp.dot(h2, w3_ref[...], preferred_element_type=jnp.float32) + b3_ref[...]
    m = jnp.max(z3, axis=1, keepdims=True)
    e = jnp.exp(z3 - m)
    o_ref[...] = (e / jnp.sum(e, axis=1, keepdims=True)).astype(o_ref.dtype)


def _pasnet_fused(xp, w1t, b1r, w2t, b2r, w3t, b3r, *, tb, vmem_limit):
    b_pad, in_p = xp.shape
    path_p, hid_p, out_p = w1t.shape[1], w2t.shape[1], w3t.shape[1]

    def resident(shape):
        # Constant block index -> block stays resident across grid steps (no re-DMA);
        # Buffered(1) drops the default double-buffering, halving its VMEM footprint.
        return pl.BlockSpec(shape, lambda i: (0, 0), pipeline_mode=pl.Buffered(1))

    return pl.pallas_call(
        _pasnet_fused_kernel,
        out_shape=jax.ShapeDtypeStruct((b_pad, out_p), jnp.float32),
        grid=(b_pad // tb,),
        in_specs=[
            pl.BlockSpec((tb, in_p), lambda i: (i, 0)),  # x tile (double-buffered pipeline)
            resident((in_p, path_p)),                    # W1^T
            resident((1, path_p)),                       # b1 (f32)
            resident((path_p, hid_p)),                   # W2^T
            resident((1, hid_p)),                        # b2 (f32)
            resident((hid_p, out_p)),                    # W3^T (lane-padded classes)
            resident((1, out_p)),                        # b3 (f32, padded classes = -1e30)
        ],
        out_specs=pl.BlockSpec((tb, out_p), lambda i: (i, 0)),
        compiler_params=pltpu.CompilerParams(
            dimension_semantics=("parallel",),  # shard batch tiles across v7x's 2 TCs
            vmem_limit_bytes=vmem_limit,
        ),
    )(xp, w1t, b1r, w2t, b2r, w3t, b3r)


# ----------------------------------------------------------------------------
# Streamed path: per-layer tiled linear with an "arbitrary" K reduction axis and
# an f32 VMEM accumulator.  Used when the weights cannot be whole-resident
# (real PASNet sizes: 5535x5000).
# ----------------------------------------------------------------------------
def _linear_sigmoid_kernel(x_ref, w_ref, b_ref, o_ref, acc_ref):
    k = pl.program_id(2)

    @pl.when(k == 0)
    def _():
        acc_ref[...] = jnp.zeros_like(acc_ref)

    acc_ref[...] += jnp.dot(x_ref[...], w_ref[...], preferred_element_type=jnp.float32)

    @pl.when(k == pl.num_programs(2) - 1)
    def _():
        z = acc_ref[...] + b_ref[...]
        o_ref[...] = _sigmoid_stable(z).astype(o_ref.dtype)


def _linear_softmax_kernel(x_ref, w_ref, b_ref, o_ref, acc_ref):
    k = pl.program_id(1)

    @pl.when(k == 0)
    def _():
        acc_ref[...] = jnp.zeros_like(acc_ref)

    acc_ref[...] += jnp.dot(x_ref[...], w_ref[...], preferred_element_type=jnp.float32)

    @pl.when(k == pl.num_programs(1) - 1)
    def _():
        z = acc_ref[...] + b_ref[...]
        m = jnp.max(z, axis=1, keepdims=True)
        e = jnp.exp(z - m)  # padded classes: bias=-1e30 -> 0
        o_ref[...] = (e / jnp.sum(e, axis=1, keepdims=True)).astype(o_ref.dtype)


def _tiled_linear_sigmoid(x, wt, b, *, tb, tn, tk, out_dtype, vmem_limit):
    B, K = x.shape
    N = wt.shape[1]
    return pl.pallas_call(
        _linear_sigmoid_kernel,
        out_shape=jax.ShapeDtypeStruct((B, N), out_dtype),
        grid=(B // tb, N // tn, K // tk),
        in_specs=[
            pl.BlockSpec((tb, tk), lambda i, j, k: (i, k)),
            pl.BlockSpec((tk, tn), lambda i, j, k: (k, j)),
            pl.BlockSpec((1, tn), lambda i, j, k: (0, j)),
        ],
        out_specs=pl.BlockSpec((tb, tn), lambda i, j, k: (i, j)),
        scratch_shapes=[pltpu.VMEM((tb, tn), jnp.float32)],
        compiler_params=pltpu.CompilerParams(
            dimension_semantics=("parallel", "parallel", "arbitrary"),
            vmem_limit_bytes=vmem_limit,
        ),
    )(x, wt, b)


def _tiled_linear_softmax(x, wt, b, *, tb, tk, vmem_limit):
    B, K = x.shape
    N = wt.shape[1]  # full (lane-padded) class axis in one tile: softmax needs every class
    return pl.pallas_call(
        _linear_softmax_kernel,
        out_shape=jax.ShapeDtypeStruct((B, N), jnp.float32),
        grid=(B // tb, K // tk),
        in_specs=[
            pl.BlockSpec((tb, tk), lambda i, k: (i, k)),
            pl.BlockSpec((tk, N), lambda i, k: (k, 0)),
            pl.BlockSpec((1, N), lambda i, k: (0, 0)),
        ],
        out_specs=pl.BlockSpec((tb, N), lambda i, k: (i, 0)),
        scratch_shapes=[pltpu.VMEM((tb, N), jnp.float32)],
        compiler_params=pltpu.CompilerParams(
            dimension_semantics=("parallel", "arbitrary"),
            vmem_limit_bytes=vmem_limit,
        ),
    )(x, wt, b)


# ----------------------------------------------------------------------------
# Public wrapper.
# ----------------------------------------------------------------------------
def pasnet_forward(x, params, *, compute_dtype=jnp.bfloat16, mode="auto",
                   block_b=None, block_n=512, block_k=512):
    """Eval-mode PASNet forward.

    x: (B, In_Nodes) float32.  params: PyTorch-convention weights (w: (out, in), b: (out,)).
    mode: "fused" (whole weights resident), "streamed" ((K,N)-tiled weights), or "auto".
    """
    w1, b1 = params["w1"], params["b1"]
    w2, b2 = params["w2"], params["b2"]
    w3, b3 = params["w3"], params["b3"]

    B, in_nodes = x.shape
    pathway, hidden, out_nodes = w1.shape[0], w2.shape[0], w3.shape[0]

    # Lane-align every feature dim (multiples of 128) -> full-lane layouts everywhere.
    in_p = _round_up(in_nodes, 128)
    path_p = _round_up(pathway, 128)
    hid_p = _round_up(hidden, 128)
    out_p = _round_up(out_nodes, 128)

    cd = jnp.dtype(compute_dtype)

    def pad2(a, r, c):
        return jnp.zeros((r, c), cd).at[: a.shape[0], : a.shape[1]].set(a.astype(cd))

    # Weights pre-transposed to (in, out), zero-padded, cast ONCE to the compute dtype.
    # Zero-padded weight ROWS kill the sigmoid(0)=0.5 activations of padded columns.
    w1t = pad2(w1.T, in_p, path_p)
    w2t = pad2(w2.T, path_p, hid_p)
    w3t = pad2(w3.T, hid_p, out_p)

    # Biases stay f32 (added post-accumulation); padded classes get -1e30.
    b1r = jnp.zeros((1, path_p), jnp.float32).at[0, :pathway].set(b1.astype(jnp.float32))
    b2r = jnp.zeros((1, hid_p), jnp.float32).at[0, :hidden].set(b2.astype(jnp.float32))
    b3r = jnp.full((1, out_p), NEG_BIG, jnp.float32).at[0, :out_nodes].set(
        b3.astype(jnp.float32))

    # Per-generation VMEM budget and batch tile (48 MiB / TB=128 on v7x; 96 MiB / 256 else).
    vmem_cap = _vmem_capacity_bytes()
    vmem_limit = min(vmem_cap * 3 // 4, 96 * 1024 * 1024)
    if block_b is None:
        block_b = 256 if vmem_cap >= 128 * 1024 * 1024 else 128

    tb = _round_up(min(block_b, _round_up(B, 8)), 8)
    b_pad = _round_up(B, tb)

    # Input: zero-pad batch & feature columns, one-time cast to the MXU input dtype.
    xp = jnp.zeros((b_pad, in_p), cd).at[:B, :in_nodes].set(x.astype(cd))

    if mode == "auto":
        isz = cd.itemsize
        resident_bytes = (
            (in_p * path_p + path_p * hid_p + hid_p * out_p) * isz   # single-buffered weights
            + (path_p + hid_p + out_p) * 4                           # f32 biases
            + 2 * tb * (in_p * isz + out_p * 4)                      # pipelined x / out tiles
            + tb * (path_p + hid_p) * (4 + isz)                      # z (f32) + h (cd) live
            + 2 * tb * out_p * 4                                     # z3 + exp
        )
        mode = "fused" if resident_bytes <= 0.8 * vmem_limit else "streamed"

    if mode == "fused":
        out = _pasnet_fused(xp, w1t, b1r, w2t, b2r, w3t, b3r, tb=tb, vmem_limit=vmem_limit)
    else:
        tn1, tk1 = _pick_tile(path_p, block_n), _pick_tile(in_p, block_k)
        tn2, tk2 = _pick_tile(hid_p, block_n), _pick_tile(path_p, block_k)
        tk3 = _pick_tile(hid_p, block_k)
        h1 = _tiled_linear_sigmoid(xp, w1t, b1r, tb=tb, tn=tn1, tk=tk1,
                                   out_dtype=cd, vmem_limit=vmem_limit)
        h2 = _tiled_linear_sigmoid(h1, w2t, b2r, tb=tb, tn=tn2, tk=tk2,
                                   out_dtype=cd, vmem_limit=vmem_limit)
        out = _tiled_linear_softmax(h2, w3t, b3r, tb=tb, tk=tk3, vmem_limit=vmem_limit)

    return out[:B, :out_nodes]


# ----------------------------------------------------------------------------
# Reference model & init (for self-test).
# ----------------------------------------------------------------------------
def init_params(key, in_nodes, pathway_nodes, hidden_nodes, out_nodes):
    """Deterministic init mimicking nn.Linear's default U(-1/sqrt(fan_in), +)."""
    ks = jax.random.split(key, 6)

    def lin(kw, kb, fan_in, fan_out):
        bound = 1.0 / jnp.sqrt(jnp.float32(fan_in))
        w = jax.random.uniform(kw, (fan_out, fan_in), jnp.float32, -bound, bound)
        b = jax.random.uniform(kb, (fan_out,), jnp.float32, -bound, bound)
        return w, b

    w1, b1 = lin(ks[0], ks[1], in_nodes, pathway_nodes)
    w2, b2 = lin(ks[2], ks[3], pathway_nodes, hidden_nodes)
    w3, b3 = lin(ks[4], ks[5], hidden_nodes, out_nodes)
    return {"w1": w1, "b1": b1, "w2": w2, "b2": b2, "w3": w3, "b3": b3}


def pasnet_ref(x, p):
    h1 = jax.nn.sigmoid(x @ p["w1"].T + p["b1"])
    h2 = jax.nn.sigmoid(h1 @ p["w2"].T + p["b2"])
    return jax.nn.softmax(h2 @ p["w3"].T + p["b3"], axis=1)


if __name__ == "__main__":
    key = jax.random.PRNGKey(0)
    kx, kp, kx2, kp2, kx3 = jax.random.split(key, 5)

    # Small shapes consistent with the module's forward.
    B, IN, PATH, HID, OUT = 8, 32, 64, 32, 8
    x = jax.random.normal(kx, (B, IN), dtype=jnp.float32)
    params = init_params(kp, IN, PATH, HID, OUT)
    y_ref = jax.block_until_ready(pasnet_ref(x, params))

    # 1) Default path: bf16 MXU inputs, f32 accumulation, fused resident weights.
    y = jax.block_until_ready(pasnet_forward(x, params))
    assert y.shape == (B, OUT)
    assert jnp.allclose(y, y_ref, atol=5e-2, rtol=5e-2), "bf16 fused path mismatch"
    assert jnp.allclose(jnp.sum(y, axis=1), 1.0, atol=1e-2), "softmax rows must sum to ~1"

    # 2) f32 compute path, fused.
    y32 = jax.block_until_ready(pasnet_forward(x, params, compute_dtype=jnp.float32))
    assert jnp.allclose(y32, y_ref, atol=1e-2, rtol=1e-2), "f32 fused path mismatch"

    # 3) Multi-step batch grid with padding (B=20, tile=8 -> grid of 3, 4 pad rows).
    x2 = jax.random.normal(kx2, (20, IN), dtype=jnp.float32)
    y2 = jax.block_until_ready(
        pasnet_forward(x2, params, block_b=8, compute_dtype=jnp.float32))
    y2_ref = jax.block_until_ready(pasnet_ref(x2, params))
    assert y2.shape == (20, OUT)
    assert jnp.allclose(y2, y2_ref, atol=1e-2, rtol=1e-2), "tiled batch path mismatch"

    # 4) Streamed (K,N)-tiled weight path (what real 5535x5000 PASNet sizes would use),
    #    exercised here with small tiles so the K / N grid axes have multiple steps.
    B2, IN2, PATH2, HID2, OUT2 = 16, 200, 300, 260, 10
    x3 = jax.random.normal(kx3, (B2, IN2), dtype=jnp.float32)
    params2 = init_params(kp2, IN2, PATH2, HID2, OUT2)
    y3_ref = jax.block_until_ready(pasnet_ref(x3, params2))
    y3 = jax.block_until_ready(
        pasnet_forward(x3, params2, mode="streamed", compute_dtype=jnp.float32,
                       block_b=8, block_n=128, block_k=128))
    assert y3.shape == (B2, OUT2)
    assert jnp.allclose(y3, y3_ref, atol=1e-2, rtol=1e-2), "streamed f32 path mismatch"

    y3b = jax.block_until_ready(
        pasnet_forward(x3, params2, mode="streamed", block_b=8,
                       block_n=128, block_k=128))
    assert jnp.allclose(y3b, y3_ref, atol=5e-2, rtol=5e-2), "streamed bf16 path mismatch"

    print("KERNEL_OK")
</pallas_src>

<mosaic_0001>
module attributes {stable_mosaic.version = 11 : i64} {
  func.func @_pasnet_fused_kernel(%arg0: i32, %arg1: memref<8x128xbf16, #tpu.memory_space<vmem>>, %arg2: memref<128x128xbf16, #tpu.memory_space<vmem>>, %arg3: memref<1x128xf32, #tpu.memory_space<vmem>>, %arg4: memref<128x128xbf16, #tpu.memory_space<vmem>>, %arg5: memref<1x128xf32, #tpu.memory_space<vmem>>, %arg6: memref<128x128xbf16, #tpu.memory_space<vmem>>, %arg7: memref<1x128xf32, #tpu.memory_space<vmem>>, %arg8: memref<8x128xf32, #tpu.memory_space<vmem>>) attributes {dimension_semantics = [#tpu.dimension_semantics<parallel>], iteration_bounds = array<i64: 1>, scalar_prefetch = 0 : i64, scratch_operands = 0 : i64, tpu.core_type = #tpu.core_type<tc>, window_params = [{transform_indices = @transform_0, window_bounds = array<i64: 8, 128>}, {pipeline_mode = #tpu.pipeline_mode<synchronous>, transform_indices = @transform_1, window_bounds = array<i64: 128, 128>}, {pipeline_mode = #tpu.pipeline_mode<synchronous>, transform_indices = @transform_2, window_bounds = array<i64: 1, 128>}, {pipeline_mode = #tpu.pipeline_mode<synchronous>, transform_indices = @transform_3, window_bounds = array<i64: 128, 128>}, {pipeline_mode = #tpu.pipeline_mode<synchronous>, transform_indices = @transform_4, window_bounds = array<i64: 1, 128>}, {pipeline_mode = #tpu.pipeline_mode<synchronous>, transform_indices = @transform_5, window_bounds = array<i64: 128, 128>}, {pipeline_mode = #tpu.pipeline_mode<synchronous>, transform_indices = @transform_6, window_bounds = array<i64: 1, 128>}, {transform_indices = @transform_7, window_bounds = array<i64: 8, 128>}]} {
    %c0 = arith.constant 0 : index
    %c0_0 = arith.constant 0 : index
    %0 = vector.load %arg1[%c0, %c0_0] : memref<8x128xbf16, #tpu.memory_space<vmem>>, vector<8x128xbf16>
    %c0_1 = arith.constant 0 : index
    %c0_2 = arith.constant 0 : index
    %1 = vector.load %arg2[%c0_1, %c0_2] : memref<128x128xbf16, #tpu.memory_space<vmem>>, vector<128x128xbf16>
    %cst = arith.constant dense<0.000000e+00> : vector<8x128xf32>
    %2 = tpu.matmul %0, %1, %cst {dimension_numbers = #tpu.dot_dimension_numbers<[1], [0], [0], [1], [0, 0, 1, 1], [], []>} : vector<8x128xbf16>, vector<128x128xbf16>, vector<8x128xf32> -> vector<8x128xf32>
    %c0_3 = arith.constant 0 : index
    %c0_4 = arith.constant 0 : index
    %3 = vector.load %arg3[%c0_3, %c0_4] : memref<1x128xf32, #tpu.memory_space<vmem>>, vector<1x128xf32>
    %4 = vector.broadcast %3 : vector<1x128xf32> to vector<8x128xf32>
    %5 = arith.addf %2, %4 : vector<8x128xf32>
    %cst_5 = arith.constant 5.000000e-01 : f32
    %6 = vector.broadcast %cst_5 : f32 to vector<8x128xf32>
    %7 = arith.mulf %6, %5 : vector<8x128xf32>
    %8 = math.tanh %7 : vector<8x128xf32>
    %cst_6 = arith.constant 1.000000e+00 : f32
    %9 = vector.broadcast %cst_6 : f32 to vector<8x128xf32>
    %10 = arith.addf %8, %9 : vector<8x128xf32>
    %cst_7 = arith.constant 5.000000e-01 : f32
    %11 = vector.broadcast %cst_7 : f32 to vector<8x128xf32>
    %12 = arith.mulf %11, %10 : vector<8x128xf32>
    %13 = arith.truncf %12 : vector<8x128xf32> to vector<8x128xbf16>
    %c0_8 = arith.constant 0 : index
    %c0_9 = arith.constant 0 : index
    %14 = vector.load %arg4[%c0_8, %c0_9] : memref<128x128xbf16, #tpu.memory_space<vmem>>, vector<128x128xbf16>
    %cst_10 = arith.constant dense<0.000000e+00> : vector<8x128xf32>
    %15 = tpu.matmul %13, %14, %cst_10 {dimension_numbers = #tpu.dot_dimension_numbers<[1], [0], [0], [1], [0, 0, 1, 1], [], []>} : vector<8x128xbf16>, vector<128x128xbf16>, vector<8x128xf32> -> vector<8x128xf32>
    %c0_11 = arith.constant 0 : index
    %c0_12 = arith.constant 0 : index
    %16 = vector.load %arg5[%c0_11, %c0_12] : memref<1x128xf32, #tpu.memory_space<vmem>>, vector<1x128xf32>
    %17 = vector.broadcast %16 : vector<1x128xf32> to vector<8x128xf32>
    %18 = arith.addf %15, %17 : vector<8x128xf32>
    %cst_13 = arith.constant 5.000000e-01 : f32
    %19 = vector.broadcast %cst_13 : f32 to vector<8x128xf32>
    %20 = arith.mulf %19, %18 : vector<8x128xf32>
    %21 = math.tanh %20 : vector<8x128xf32>
    %cst_14 = arith.constant 1.000000e+00 : f32
    %22 = vector.broadcast %cst_14 : f32 to vector<8x128xf32>
    %23 = arith.addf %21, %22 : vector<8x128xf32>
    %cst_15 = arith.constant 5.000000e-01 : f32
    %24 = vector.broadcast %cst_15 : f32 to vector<8x128xf32>
    %25 = arith.mulf %24, %23 : vector<8x128xf32>
    %26 = arith.truncf %25 : vector<8x128xf32> to vector<8x128xbf16>
    %c0_16 = arith.constant 0 : index
    %c0_17 = arith.constant 0 : index
    %27 = vector.load %arg6[%c0_16, %c0_17] : memref<128x128xbf16, #tpu.memory_space<vmem>>, vector<128x128xbf16>
    %cst_18 = arith.constant dense<0.000000e+00> : vector<8x128xf32>
    %28 = tpu.matmul %26, %27, %cst_18 {dimension_numbers = #tpu.dot_dimension_numbers<[1], [0], [0], [1], [0, 0, 1, 1], [], []>} : vector<8x128xbf16>, vector<128x128xbf16>, vector<8x128xf32> -> vector<8x128xf32>
    %c0_19 = arith.constant 0 : index
    %c0_20 = arith.constant 0 : index
    %29 = vector.load %arg7[%c0_19, %c0_20] : memref<1x128xf32, #tpu.memory_space<vmem>>, vector<1x128xf32>
    %30 = vector.broadcast %29 : vector<1x128xf32> to vector<8x128xf32>
    %31 = arith.addf %28, %30 : vector<8x128xf32>
    %cst_21 = arith.constant dense<0xFF800000> : vector<8xf32>
    %32 = vector.multi_reduction <maximumf>, %31, %cst_21 [1] : vector<8x128xf32> to vector<8xf32>
    %33 = vector.shape_cast %32 : vector<8xf32> to vector<8x1xf32>
    %34 = vector.broadcast %33 : vector<8x1xf32> to vector<8x128xf32>
    %35 = arith.subf %31, %34 : vector<8x128xf32>
    %36 = math.exp %35 : vector<8x128xf32>
    %cst_22 = arith.constant dense<0.000000e+00> : vector<8xf32>
    %37 = vector.multi_reduction <add>, %36, %cst_22 [1] : vector<8x128xf32> to vector<8xf32>
    %38 = vector.shape_cast %37 : vector<8xf32> to vector<8x1xf32>
    %39 = vector.broadcast %38 : vector<8x1xf32> to vector<8x128xf32>
    %40 = arith.divf %36, %39 : vector<8x128xf32>
    %c0_23 = arith.constant 0 : index
    %c0_24 = arith.constant 0 : index
    %41 = vector.load %arg8[%c0_23, %c0_24] : memref<8x128xf32, #tpu.memory_space<vmem>>, vector<8x128xf32>
    tpu.vector_store %arg8[%c0_23, %c0_24], %40 {strides = array<i32>} : memref<8x128xf32, #tpu.memory_space<vmem>>, vector<8x128xf32>,
    return
  }
  func.func @transform_0(%arg0: i32) -> (i32, i32) {
    %c0_i32 = arith.constant 0 : i32
    %c0_i32_0 = arith.constant 0 : i32
    return %arg0, %c0_i32 : i32, i32
  }
  func.func @transform_1(%arg0: i32) -> (i32, i32) {
    %c0_i32 = arith.constant 0 : i32
    %c0_i32_0 = arith.constant 0 : i32
    %c0_i32_1 = arith.constant 0 : i32
    return %c0_i32, %c0_i32_0 : i32, i32
  }
  func.func @transform_2(%arg0: i32) -> (i32, i32) {
    %c0_i32 = arith.constant 0 : i32
    %c0_i32_0 = arith.constant 0 : i32
    %c0_i32_1 = arith.constant 0 : i32
    return %c0_i32, %c0_i32_0 : i32, i32
  }
  func.func @transform_3(%arg0: i32) -> (i32, i32) {
    %c0_i32 = arith.constant 0 : i32
    %c0_i32_0 = arith.constant 0 : i32
    %c0_i32_1 = arith.constant 0 : i32
    return %c0_i32, %c0_i32_0 : i32, i32
  }
  func.func @transform_4(%arg0: i32) -> (i32, i32) {
    %c0_i32 = arith.constant 0 : i32
    %c0_i32_0 = arith.constant 0 : i32
    %c0_i32_1 = arith.constant 0 : i32
    return %c0_i32, %c0_i32_0 : i32, i32
  }
  func.func @transform_5(%arg0: i32) -> (i32, i32) {
    %c0_i32 = arith.constant 0 : i32
    %c0_i32_0 = arith.constant 0 : i32
    %c0_i32_1 = arith.constant 0 : i32
    return %c0_i32, %c0_i32_0 : i32, i32
  }
  func.func @transform_6(%arg0: i32) -> (i32, i32) {
    %c0_i32 = arith.constant 0 : i32
    %c0_i32_0 = arith.constant 0 : i32
    %c0_i32_1 = arith.constant 0 : i32
    return %c0_i32, %c0_i32_0 : i32, i32
  }
  func.func @transform_7(%arg0: i32) -> (i32, i32) {
    %c0_i32 = arith.constant 0 : i32
    %c0_i32_0 = arith.constant 0 : i32
    return %arg0, %c0_i32 : i32, i32
  }
}

</mosaic_0001>

<llo_original>
// kernel: tpu_custom_call.1
$region0: #{tpu_custom_call.1}
  #allocation0 [shape = 'u32[]', space=smem, size = 0x4, offset = 0x4, fixed_abs, tag = 'smem constant byte address 0x4 - core index']
  #allocation1 [shape = 'u32[72,128]{1,0:T(1,128)}', space=vmem, size = 0x9000, scoped, tag = 'internal scratch']
  %s0 = inlined_call_operand.hbm [shape: bf16[8,128], index: 0, kind: input, shape index: {}]
  %s1 = inlined_call_operand.hbm [shape: bf16[128,128], index: 1, kind: input, shape index: {}]
  %s2 = inlined_call_operand.vmem [shape: f32[1,128], index: 2, kind: input, shape index: {}]
  %s3 = inlined_call_operand.hbm [shape: bf16[128,128], index: 3, kind: input, shape index: {}]
  %s4 = inlined_call_operand.vmem [shape: f32[1,128], index: 4, kind: input, shape index: {}]
  %s5 = inlined_call_operand.hbm [shape: bf16[128,128], index: 5, kind: input, shape index: {}]
  %s6 = inlined_call_operand.vmem [shape: f32[1,128], index: 6, kind: input, shape index: {}]
  %s7 = inlined_call_operand.hbm [shape: f32[8,128], index: 7, kind: output, shape index: {}]
  %s8 = sld [smem:[#allocation0]]
  $region54: #{tpu_custom_call.1} parent=0
    _
  %s10 = ssub.s32 1, %s8
  %s11 = scalar_select 0, %s10, %s8
  $region1: #{tpu_custom_call.1} parent=0
    #allocation2 [shape = 'u8[2048]{0}', space=vmem, size = 0x800, scoped, tag = 'input window, operand 0, single buffered']
    #allocation3 [shape = 's32[1]{0}', space=sflag, size = 0x4, scoped, tag = 'scoped memory for tpu_custom_call.1']
    #allocation4 [shape = 's32[1]{0}', space=sflag, size = 0x4, scoped, tag = 'scoped memory for tpu_custom_call.1']
    #allocation5 [shape = 'u8[32768]{0}', space=vmem, size = 0x8000, scoped, tag = 'input window, operand 1, single buffered']
    #allocation6 [shape = 's32[1]{0}', space=sflag, size = 0x4, scoped, tag = 'scoped memory for tpu_custom_call.1']
    #allocation7 [shape = 'u8[32768]{0}', space=vmem, size = 0x8000, scoped, tag = 'input window, operand 3, single buffered']
    #allocation8 [shape = 'u8[32768]{0}', space=vmem, size = 0x8000, scoped, tag = 'input window, operand 5, single buffered']
    #allocation9 [shape = 's32[1]{0}', space=sflag, size = 0x4, scoped, tag = 'scoped memory for tpu_custom_call.1']
    #allocation10 [shape = 'u8[4096]{0}', space=vmem, size = 0x1000, scoped, tag = 'output window, operand 0, single buffered']
    %12 = vsyncpa [#allocation3], 0
    %13 = vsyncpa [#allocation6], 0
    %14 = vsyncpa [#allocation9], 0
    %15 = vsyncpa [#allocation4], 0
    // Predicated region
    $region2: #{tpu_custom_call.1} parent=1 // pred_check
      _
    $region3: #{tpu_custom_call.1} parent=1 // pred_check_branch
      %17 = sbr.rel (0) target = $region5
    $region4: #{tpu_custom_call.1} parent=1 // pred_region
      %19 = vsyncadd [#allocation3], 0
      %s21 = sshll.u32 %s0, 4
      %s22 = int_to_ptr.hbm [resolvable:$true] %s21
      %s23 = sshll.u32 [#allocation2], 4
      %s24 = int_to_ptr.vmem [resolvable:$true] %s23
      %26 = dma.hbm_to_vmem [thread:$0]  %s22, 64, %s24, [#allocation3]
    $region5: #{tpu_custom_call.1} parent=1 // pred_fallthru
      _
    // Predicated region
    $region6: #{tpu_custom_call.1} parent=1 // pred_check
      _
    $region7: #{tpu_custom_call.1} parent=1 // pred_check_branch
      %28 = sbr.rel (0) target = $region9
    $region8: #{tpu_custom_call.1} parent=1 // pred_region
      %30 = vsyncadd [#allocation6], 0
      %s31 = sshll.u32 %s1, 4
      %s32 = int_to_ptr.hbm [resolvable:$true] %s31
      %s33 = sshll.u32 [#allocation5], 4
      %s34 = int_to_ptr.vmem [resolvable:$true] %s33
      %39 = dma.hbm_to_vmem [thread:$0]  %s32, 1024, %s34, [#allocation6], 64, 64, 4
    $region9: #{tpu_custom_call.1} parent=1 // pred_fallthru
      _
    // Predicated region
    $region10: #{tpu_custom_call.1} parent=1 // pred_check
      _
    $region11: #{tpu_custom_call.1} parent=1 // pred_check_branch
      %41 = sbr.rel (0) target = $region13
    $region12: #{tpu_custom_call.1} parent=1 // pred_region
      _
    $region13: #{tpu_custom_call.1} parent=1 // pred_fallthru
      _
    // Predicated region
    $region14: #{tpu_custom_call.1} parent=1 // pred_check
      _
    $region15: #{tpu_custom_call.1} parent=1 // pred_check_branch
      %43 = sbr.rel (0) target = $region17
    $region16: #{tpu_custom_call.1} parent=1 // pred_region
      %45 = vsyncadd [#allocation6], 0
      %s46 = sshll.u32 %s3, 4
      %s47 = int_to_ptr.hbm [resolvable:$true] %s46
      %s48 = sshll.u32 [#allocation7], 4
      %s49 = int_to_ptr.vmem [resolvable:$true] %s48
      %54 = dma.hbm_to_vmem [thread:$0]  %s47, 1024, %s49, [#allocation6], 64, 64, 4
    $region17: #{tpu_custom_call.1} parent=1 // pred_fallthru
      _
    // Predicated region
    $region18: #{tpu_custom_call.1} parent=1 // pred_check
      _
    $region19: #{tpu_custom_call.1} parent=1 // pred_check_branch
      %56 = sbr.rel (0) target = $region21
    $region20: #{tpu_custom_call.1} parent=1 // pred_region
      _
    $region21: #{tpu_custom_call.1} parent=1 // pred_fallthru
      _
    // Predicated region
    $region22: #{tpu_custom_call.1} parent=1 // pred_check
      _
    $region23: #{tpu_custom_call.1} parent=1 // pred_check_branch
      %58 = sbr.rel (0) target = $region25
    $region24: #{tpu_custom_call.1} parent=1 // pred_region
      %60 = vsyncadd [#allocation9], 0
      %s61 = sshll.u32 %s5, 4
      %s62 = int_to_ptr.hbm [resolvable:$true] %s61
      %s63 = sshll.u32 [#allocation8], 4
      %s64 = int_to_ptr.vmem [resolvable:$true] %s63
      %69 = dma.hbm_to_vmem [thread:$0]  %s62, 1024, %s64, [#allocation9], 64, 64, 4
    $region25: #{tpu_custom_call.1} parent=1 // pred_fallthru
      _
    // Predicated region
    $region26: #{tpu_custom_call.1} parent=1 // pred_check
      _
    $region27: #{tpu_custom_call.1} parent=1 // pred_check_branch
      %71 = sbr.rel (0) target = $region29
    $region28: #{tpu_custom_call.1} parent=1 // pred_region
      _
    $region29: #{tpu_custom_call.1} parent=1 // pred_fallthru
      _
    // Predicated region
    $region30: #{tpu_custom_call.1} parent=1 // pred_check
      _
    $region31: #{tpu_custom_call.1} parent=1 // pred_check_branch
      %73 = sbr.rel (0) target = $region33
    $region32: #{tpu_custom_call.1} parent=1 // pred_region
      %75 = dma.done [#allocation3], 64
    $region33: #{tpu_custom_call.1} parent=1 // pred_fallthru
      _
    // Predicated region
    $region34: #{tpu_custom_call.1} parent=1 // pred_check
      _
    $region35: #{tpu_custom_call.1} parent=1 // pred_check_branch
      %77 = sbr.rel (0) target = $region37
    $region36: #{tpu_custom_call.1} parent=1 // pred_region
      %79 = dma.done [#allocation6], 1024
    $region37: #{tpu_custom_call.1} parent=1 // pred_fallthru
      _
    // Predicated region
    $region38: #{tpu_custom_call.1} parent=1 // pred_check
      _
    $region39: #{tpu_custom_call.1} parent=1 // pred_check_branch
      %81 = sbr.rel (0) target = $region41
    $region40: #{tpu_custom_call.1} parent=1 // pred_region
      %83 = dma.done [#allocation6], 1024
    $region41: #{tpu_custom_call.1} parent=1 // pred_fallthru
      _
    // Predicated region
    $region42: #{tpu_custom_call.1} parent=1 // pred_check
      _
    $region43: #{tpu_custom_call.1} parent=1 // pred_check_branch
      %85 = sbr.rel (0) target = $region45
    $region44: #{tpu_custom_call.1} parent=1 // pred_region
      %87 = dma.done [#allocation9], 1024
    $region45: #{tpu_custom_call.1} parent=1 // pred_fallthru
      _
    %v88 = vld [vmem:[#allocation2] sm:$0xf]
    %v89 = vld [vmem:[#allocation5] sm:$0xf]
    %v90 = vld [vmem:[#allocation5 + $0x4] sm:$0xf]
    %v91 = vld [vmem:[#allocation5 + $0x8] sm:$0xf]
    %v92 = vld [vmem:[#allocation5 + $0xc] sm:$0xf]
    %v93 = vld [vmem:[#allocation5 + $0x10] sm:$0xf]
    %v94 = vld [vmem:[#allocation5 + $0x14] sm:$0xf]
    %v95 = vld [vmem:[#allocation5 + $0x18] sm:$0xf]
    %v96 = vld [vmem:[#allocation5 + $0x1c] sm:$0xf]
    %v97 = vld [vmem:[#allocation5 + $0x20] sm:$0xf]
    %v98 = vld [vmem:[#allocation5 + $0x24] sm:$0xf]
    %v99 = vld [vmem:[#allocation5 + $0x28] sm:$0xf]
    %v100 = vld [vmem:[#allocation5 + $0x2c] sm:$0xf]
    %v101 = vld [vmem:[#allocation5 + $0x30] sm:$0xf]
    %v102 = vld [vmem:[#allocation5 + $0x34] sm:$0xf]
    %v103 = vld [vmem:[#allocation5 + $0x38] sm:$0xf]
    %v104 = vld [vmem:[#allocation5 + $0x3c] sm:$0xf]
    %v105 = vld [vmem:[%s2] sm:$0x1]
    %v107 = vperm.slane %v105, 0
    %v125 = vunpack.c.l.b16 %v89
    %v126 = vunpack.c.l.b16 %v90
    %v127 = vunpack.c.l.b16 %v91
    %v128 = vunpack.c.l.b16 %v92
    %v129 = vunpack.c.l.b16 %v93
    %v130 = vunpack.c.l.b16 %v94
    %v131 = vunpack.c.l.b16 %v95
    %v132 = vunpack.c.l.b16 %v96
    %v133 = vunpack.c.l.b16 %v97
    %v134 = vunpack.c.l.b16 %v98
    %v135 = vunpack.c.l.b16 %v99
    %v136 = vunpack.c.l.b16 %v100
    %v137 = vunpack.c.l.b16 %v101
    %v138 = vunpack.c.l.b16 %v102
    %v139 = vunpack.c.l.b16 %v103
    %v140 = vunpack.c.l.b16 %v104
    %v141 = vpack.c.b16 %v126, %v125
    %v142 = vpack.c.b16 %v128, %v127
    %v143 = vpack.c.b16 %v130, %v129
    %v144 = vpack.c.b16 %v132, %v131
    %v145 = vpack.c.b16 %v134, %v133
    %v146 = vpack.c.b16 %v136, %v135
    %v147 = vpack.c.b16 %v138, %v137
    %v148 = vpack.c.b16 %v140, %v139
    %157 = vmatpush.bf16.msra.mxu0 %v148
    %158 = vmatpush.bf16.msra.mxu0 %v147
    %159 = vmatpush.bf16.msra.mxu0 %v146
    %160 = vmatpush.bf16.msra.mxu0 %v145
    %161 = vmatpush.bf16.msra.mxu0 %v144
    %162 = vmatpush.bf16.msra.mxu0 %v143
    %163 = vmatpush.bf16.msra.mxu0 %v142
    %164 = vmatpush.bf16.msra.mxu0 %v141
    %165 = vmatmul.bf16.gmra.mxu0 %v88
    %v166 = vpop.f32.mrf.mxu0
    %v167 = vadd.f32 %v107, %v166
    %v168 = vpop.f32.mrf.mxu0
    %169 = vdwg.mxu0
    %v170 = vmul.f32 %v167, 0.5
    %v171 = vtanh.pop %v170
    %v172 = vadd.f32 %v171, 1.0
    %v173 = vmul.f32 %v172, 0.5
    %v174 = vpack.c.bf16 %v173, %v173
    %v175 = vld [vmem:[#allocation7] sm:$0xf]
    %v176 = vld [vmem:[#allocation7 + $0x4] sm:$0xf]
    %v177 = vld [vmem:[#allocation7 + $0x8] sm:$0xf]
    %v178 = vld [vmem:[#allocation7 + $0xc] sm:$0xf]
    %v179 = vld [vmem:[#allocation7 + $0x10] sm:$0xf]
    %v180 = vld [vmem:[#allocation7 + $0x14] sm:$0xf]
    %v181 = vld [vmem:[#allocation7 + $0x18] sm:$0xf]
    %v182 = vld [vmem:[#allocation7 + $0x1c] sm:$0xf]
    %v183 = vld [vmem:[#allocation7 + $0x20] sm:$0xf]
    %v184 = vld [vmem:[#allocation7 + $0x24] sm:$0xf]
    %v185 = vld [vmem:[#allocation7 + $0x28] sm:$0xf]
    %v186 = vld [vmem:[#allocation7 + $0x2c] sm:$0xf]
    %v187 = vld [vmem:[#allocation7 + $0x30] sm:$0xf]
    %v188 = vld [vmem:[#allocation7 + $0x34] sm:$0xf]
    %v189 = vld [vmem:[#allocation7 + $0x38] sm:$0xf]
    %v190 = vld [vmem:[#allocation7 + $0x3c] sm:$0xf]
    %v191 = vld [vmem:[%s4] sm:$0x1]
    %v193 = vperm.slane %v191, 0
    %v211 = vunpack.c.l.b16 %v175
    %v212 = vunpack.c.l.b16 %v176
    %v213 = vunpack.c.l.b16 %v177
    %v214 = vunpack.c.l.b16 %v178
    %v215 = vunpack.c.l.b16 %v179
    %v216 = vunpack.c.l.b16 %v180
    %v217 = vunpack.c.l.b16 %v181
    %v218 = vunpack.c.l.b16 %v182
    %v219 = vunpack.c.l.b16 %v183
    %v220 = vunpack.c.l.b16 %v184
    %v221 = vunpack.c.l.b16 %v185
    %v222 = vunpack.c.l.b16 %v186
    %v223 = vunpack.c.l.b16 %v187
    %v224 = vunpack.c.l.b16 %v188
    %v225 = vunpack.c.l.b16 %v189
    %v226 = vunpack.c.l.b16 %v190
    %v227 = vpack.c.b16 %v212, %v211
    %v228 = vpack.c.b16 %v214, %v213
    %v229 = vpack.c.b16 %v216, %v215
    %v230 = vpack.c.b16 %v218, %v217
    %v231 = vpack.c.b16 %v220, %v219
    %v232 = vpack.c.b16 %v222, %v221
    %v233 = vpack.c.b16 %v224, %v223
    %v234 = vpack.c.b16 %v226, %v225
    %243 = vmatpush.bf16.msra.mxu0 %v234
    %244 = vmatpush.bf16.msra.mxu0 %v233
    %245 = vmatpush.bf16.msra.mxu0 %v232
    %246 = vmatpush.bf16.msra.mxu0 %v231
    %247 = vmatpush.bf16.msra.mxu0 %v230
    %248 = vmatpush.bf16.msra.mxu0 %v229
    %249 = vmatpush.bf16.msra.mxu0 %v228
    %250 = vmatpush.bf16.msra.mxu0 %v227
    %251 = vmatmul.bf16.gmra.mxu0 %v174
    %v252 = vpop.f32.mrf.mxu0
    %v253 = vadd.f32 %v193, %v252
    %v254 = vpop.f32.mrf.mxu0
    %255 = vdwg.mxu0
    %v256 = vmul.f32 %v253, 0.5
    %v257 = vtanh.pop %v256
    %v258 = vadd.f32 %v257, 1.0
    %v259 = vmul.f32 %v258, 0.5
    %v260 = vpack.c.bf16 %v259, %v259
    %v261 = vld [vmem:[#allocation8] sm:$0xf]
    %v262 = vld [vmem:[#allocation8 + $0x4] sm:$0xf]
    %v263 = vld [vmem:[#allocation8 + $0x8] sm:$0xf]
    %v264 = vld [vmem:[#allocation8 + $0xc] sm:$0xf]
    %v265 = vld [vmem:[#allocation8 + $0x10] sm:$0xf]
    %v266 = vld [vmem:[#allocation8 + $0x14] sm:$0xf]
    %v267 = vld [vmem:[#allocation8 + $0x18] sm:$0xf]
    %v268 = vld [vmem:[#allocation8 + $0x1c] sm:$0xf]
    %v269 = vld [vmem:[#allocation8 + $0x20] sm:$0xf]
    %v270 = vld [vmem:[#allocation8 + $0x24] sm:$0xf]
    %v271 = vld [vmem:[#allocation8 + $0x28] sm:$0xf]
    %v272 = vld [vmem:[#allocation8 + $0x2c] sm:$0xf]
    %v273 = vld [vmem:[#allocation8 + $0x30] sm:$0xf]
    %v274 = vld [vmem:[#allocation8 + $0x34] sm:$0xf]
    %v275 = vld [vmem:[#allocation8 + $0x38] sm:$0xf]
    %v276 = vld [vmem:[#allocation8 + $0x3c] sm:$0xf]
    %v277 = vld [vmem:[%s6] sm:$0x1]
    %v279 = vperm.slane %v277, 0
    %v297 = vunpack.c.l.b16 %v261
    %v298 = vunpack.c.l.b16 %v262
    %v299 = vunpack.c.l.b16 %v263
    %v300 = vunpack.c.l.b16 %v264
    %v301 = vunpack.c.l.b16 %v265
    %v302 = vunpack.c.l.b16 %v266
    %v303 = vunpack.c.l.b16 %v267
    %v304 = vunpack.c.l.b16 %v268
    %v305 = vunpack.c.l.b16 %v269
    %v306 = vunpack.c.l.b16 %v270
    %v307 = vunpack.c.l.b16 %v271
    %v308 = vunpack.c.l.b16 %v272
    %v309 = vunpack.c.l.b16 %v273
    %v310 = vunpack.c.l.b16 %v274
    %v311 = vunpack.c.l.b16 %v275
    %v312 = vunpack.c.l.b16 %v276
    %v313 = vpack.c.b16 %v298, %v297
    %v314 = vpack.c.b16 %v300, %v299
    %v315 = vpack.c.b16 %v302, %v301
    %v316 = vpack.c.b16 %v304, %v303
    %v317 = vpack.c.b16 %v306, %v305
    %v318 = vpack.c.b16 %v308, %v307
    %v319 = vpack.c.b16 %v310, %v309
    %v320 = vpack.c.b16 %v312, %v311
    %329 = vmatpush.bf16.msra.mxu0 %v320
    %330 = vmatpush.bf16.msra.mxu0 %v319
    %331 = vmatpush.bf16.msra.mxu0 %v318
    %332 = vmatpush.bf16.msra.mxu0 %v317
    %333 = vmatpush.bf16.msra.mxu0 %v316
    %334 = vmatpush.bf16.msra.mxu0 %v315
    %335 = vmatpush.bf16.msra.mxu0 %v314
    %336 = vmatpush.bf16.msra.mxu0 %v313
    %337 = vmatmul.bf16.gmra.mxu0 %v260
    %v338 = vpop.f32.mrf.mxu0
    %v339 = vadd.f32 %v279, %v338
    %v340 = vpop.f32.mrf.mxu0
    %341 = vdwg.mxu0
    %342 = vmax.xlane.f32.xlu0 %v339
    %v343 = vpop.xlane.xlu0 %342
    %v344 = vsub.f32 %v339, %v343
    %v345 = vmul.f32 %v344, 1.442695
    %v346 = vpow.pop %v345
    %347 = vadd.xlane.f32.xlu0 %v346
    %v348 = vpop.xlane.xlu0 %347
    %v349 = vrcp.pop %v348
    %v350 = vmul.f32 %v348, %v349
    %v351 = vsub.f32 1.0, %v350
    %v352 = vmul.f32 %v349, %v351
    %v353 = vadd.f32 %v349, %v352
    %vm354 = vweird.f32 %v348
    %vm355 = vweird.f32 %v349
    %vm356 = vmor %vm354, %vm355
    %v357 = vsel %vm356, %v349, %v353
    %v358 = vand.u32 2147483647, %v348
    %vm359 = vcmp.eq.f32.partialorder %v358, 8.507059e+37
    %v360 = vand.u32 %v348, 2147483648
    %v361 = vor.u32 1.1754944e-38, %v360
    %v362 = vsel %vm359, %v361, %v357
    %v363 = vmul.f32 %v346, %v362
    %364 = vst [vmem:[#allocation10] sm:$0xff] %v363
    // Predicated region
    $region46: #{tpu_custom_call.1} parent=1 // pred_check
      _
    $region47: #{tpu_custom_call.1} parent=1 // pred_check_branch
      %366 = sbr.rel (0) target = $region49
    $region48: #{tpu_custom_call.1} parent=1 // pred_region
      %368 = vsyncadd [#allocation4], 0
      %s370 = sshll.u32 [#allocation10], 4
      %s371 = int_to_ptr.vmem [resolvable:$true] %s370
      %s372 = sshll.u32 %s7, 4
      %s373 = int_to_ptr.hbm [resolvable:$true] %s372
      %375 = dma.vmem_to_hbm [thread:$0]  %s371, 128, %s373, [#allocation4]
    $region49: #{tpu_custom_call.1} parent=1 // pred_fallthru
      _
    // Predicated region
    $region50: #{tpu_custom_call.1} parent=1 // pred_check
      _
    $region51: #{tpu_custom_call.1} parent=1 // pred_check_branch
      %377 = sbr.rel (0) target = $region53
    $region52: #{tpu_custom_call.1} parent=1 // pred_region
      %379 = dma.done [#allocation4], 128
    $region53: #{tpu_custom_call.1} parent=1 // pred_fallthru
      _
    %380 = vsyncpa [#allocation3], 1
    %381 = vsyncpa [#allocation6], 1
    %382 = vsyncpa [#allocation9], 1
    %383 = vsyncpa [#allocation4], 1

</llo_original>
